<compile_context>
chip_gen: v7x
topology: tpu7x:2x2x1
jax: 0.10.0
libtpu: 0.0.40
codegen_flags: <defaults>
</compile_context>

<pallas_src>
import math
import jax
import jax.numpy as jnp
from jax.experimental import pallas as pl
from jax.experimental.pallas import tpu as pltpu

N_GHOST = 10     # as in the PyTorch file


# -----------------------------------------------------------------------------
# Kernel: everything lane-dense (samples on the 128-lane axis), sub-models fused
# -----------------------------------------------------------------------------
def joint_gp_kernel(c_ref, dc_ref, waug_ref, at_ref, kinv_ref, sel_ref,
                    asf2_ref, out_ref):
    c = c_ref[...]                                        # (Nc, TM) f32
    dc = dc_ref[...]                                      # (Nc, TM) f32
    nc, tm = c.shape
    k_aug = waug_ref.shape[1]                             # 2*Nc+1 padded to mult-of-8

    # Augmented features [c; c*c; 1; 0-pad] so the whole exponent (incl. bias
    # and the -0.5*||c||^2/ls2 term) is one MXU matmul with no VPU epilogue.
    parts = [c, c * c, jnp.ones((1, tm), jnp.float32)]
    pad_rows = k_aug - 2 * nc - 1
    if pad_rows > 0:
        parts.append(jnp.zeros((pad_rows, tm), jnp.float32))
    c_aug = jnp.concatenate(parts, axis=0)                # (k_aug, TM)

    # Exponent for all Nc sub-models / ghost points at once (block-packed rows):
    #   m[i*G+g, :] = (z_g.c)/ls2_i - 0.5*||c||^2/ls2_i - 0.5*||z_g||^2/ls2_i
    m = jnp.dot(waug_ref[...], c_aug, preferred_element_type=jnp.float32)  # (NcG, TM)
    e = jnp.exp(m)                                        # f32 (EUP; no bf16 on v5e)
    e16 = e.astype(jnp.bfloat16)

    # Predictive mean per channel; alpha pre-scaled by (a_i * sf2_i).  bf16 MXU.
    mean_c = jnp.dot(at_ref[...], e16, preferred_element_type=jnp.float32)  # (Nc, TM)

    # Quadratic form per channel; Kzz^-1 pre-scaled by (a_i * sf2_i)^2.  bf16 MXU.
    v = jnp.dot(kinv_ref[...], e16, preferred_element_type=jnp.float32)     # (NcG, TM)
    # Per-channel segment sum as a small f32 indicator matmul (keeps the
    # cancellation-prone (asf2 - quad) term at f32 precision).
    quad = jnp.dot(sel_ref[...], v * e, preferred_element_type=jnp.float32)  # (Nc, TM)

    # ypred = sum_i a_i*ypred_i*dC_i ; yvar = sum_i a_i^2*(sf2_i - q_i)*dC_i^2
    ypred = jnp.sum(mean_c * dc, axis=0, keepdims=True)                      # (1, TM)
    yvar = jnp.sum((asf2_ref[...] - quad) * (dc * dc), axis=0, keepdims=True)
    out_ref[...] = jnp.concatenate([ypred, yvar], axis=0)                    # (2, TM)


# -----------------------------------------------------------------------------
# Tile-size heuristic
# -----------------------------------------------------------------------------
def _pick_tile_m(n):
    n128 = ((n + 127) // 128) * 128
    if n128 <= 2048:
        return n128                 # single tile: per-grid-step overhead paid once
    # Large N: big lane tiles; prefer an even grid so v7x's two TensorCores get
    # equal work along the parallel axis (harmless on 1-TC v5e/v6e).
    for tm in (4096, 2048):
        if pl.cdiv(n128, tm) % 2 == 0:
            return tm
    return 2048


# -----------------------------------------------------------------------------
# Wrapper
# -----------------------------------------------------------------------------
def linear_joint_gp_forward(C_cm, dC_cm, tables, *, tile_m=None):
    """C_cm, dC_cm: channel-major (Nc, N) float32 (preferred: avoids a host-side
    transpose / extra HBM round-trip).  Returns (ypred, yvar), each (N, 1)."""
    W_aug, at_bd, kinv_bd, sel, asf2 = tables
    Nc, N = C_cm.shape
    NcG_pad, K_aug = W_aug.shape

    if tile_m is None:
        tile_m = _pick_tile_m(N)
    n_pad = pl.cdiv(N, tile_m) * tile_m
    grid = (n_pad // tile_m,)

    Ct = C_cm.astype(jnp.float32)
    dCt = dC_cm.astype(jnp.float32)
    if n_pad != N:
        # Single fused pad op; padded columns are zeroed by dC so they only
        # produce zeros that are sliced away below.
        Ct = jnp.pad(Ct, ((0, 0), (0, n_pad - N)))
        dCt = jnp.pad(dCt, ((0, 0), (0, n_pad - N)))

    out = pl.pallas_call(
        joint_gp_kernel,
        out_shape=jax.ShapeDtypeStruct((2, n_pad), jnp.float32),
        grid_spec=pltpu.PrefetchScalarGridSpec(
            num_scalar_prefetch=0,
            grid=grid,
            in_specs=[
                pl.BlockSpec((Nc, tile_m), lambda n: (0, n)),        # C  (channel-major)
                pl.BlockSpec((Nc, tile_m), lambda n: (0, n)),        # dC (channel-major)
                # Constant tables: constant index_map -> fetched once, never re-DMA'd.
                pl.BlockSpec((NcG_pad, K_aug), lambda n: (0, 0)),    # W_aug (f32)
                pl.BlockSpec((Nc, NcG_pad), lambda n: (0, 0)),       # alpha^T blk-diag *a*sf2 (bf16)
                pl.BlockSpec((NcG_pad, NcG_pad), lambda n: (0, 0)),  # Kzz^-1 blk-diag *(a*sf2)^2 (bf16)
                pl.BlockSpec((Nc, NcG_pad), lambda n: (0, 0)),       # per-channel selector (f32)
                pl.BlockSpec((Nc, 1), lambda n: (0, 0)),             # a^2 * sf2 (f32)
            ],
            out_specs=pl.BlockSpec((2, tile_m), lambda n: (0, n)),   # [ypred; yvar], lane-dense
        ),
        compiler_params=pltpu.CompilerParams(dimension_semantics=("parallel",)),
    )(Ct, dCt, W_aug, at_bd, kinv_bd, sel, asf2)

    # (2, n_pad) -> two (N, 1) arrays: layout plumbing in the wrapper.
    return out[0, :N].reshape(N, 1), out[1, :N].reshape(N, 1)


def linear_joint_gp_forward_rowmajor(C, dC, tables, *, tile_m=None):
    """API-parity helper for (N, Nc) inputs (same layout as the PyTorch module).
    Prefer keeping C/dC channel-major upstream to skip the transpose."""
    return linear_joint_gp_forward(C.T, dC.T, tables, tile_m=tile_m)


# -----------------------------------------------------------------------------
# Parameter construction (mirrors linear_jointGP.__init__ with one RBF ghost-GP
# per channel) + constant folding into packed block-diagonal tables.
# -----------------------------------------------------------------------------
def build_params(key, Nc, *, noise=1e-1):
    n_ghost = math.ceil(N_GHOST)
    keys = jax.random.split(key, 2 * Nc)
    raw = []
    for i in range(Nc):
        Z = jax.random.normal(keys[2 * i], (n_ghost, Nc), jnp.float32)
        y = jax.random.normal(keys[2 * i + 1], (n_ghost, 1), jnp.float32)
        sf2 = 1.0 + 0.1 * i          # per-channel hyper-params (exercise folding)
        ls2 = 1.0 + 0.25 * i
        d2 = (jnp.sum(Z * Z, 1, keepdims=True) + jnp.sum(Z * Z, 1)[None, :]
              - 2.0 * Z @ Z.T)
        Kzz = sf2 * jnp.exp(-0.5 * d2 / ls2) + noise * jnp.eye(n_ghost, dtype=jnp.float32)
        Kinv = jnp.linalg.inv(Kzz).astype(jnp.float32)
        alpha = (Kinv @ y).astype(jnp.float32)
        raw.append(dict(Z=Z, alpha=alpha, Kinv=Kinv, sf2=sf2, ls2=ls2))

    # mixing weights a (nn.Parameter in the module; init sets a[0]=1, rest 0 —
    # use a generic "trained" vector here so all channels are exercised)
    a = jnp.array([1.0] + [((-1.0) ** j) * 0.3 / j for j in range(1, Nc)],
                  jnp.float32)
    return raw, a


def pack_tables(raw, a):
    """Fold a_i / sf2_i / ls2_i into packed block-diagonal constant tables.
    No ghost padding: G is the real ghost count; only the total NcG (and the
    augmented-feature K) are padded up to a multiple of 8 for sublane layout."""
    Nc = len(raw)
    G = raw[0]["Z"].shape[0]
    NcG = Nc * G
    NcG_pad = ((NcG + 7) // 8) * 8
    K_aug = 2 * Nc + 1                      # [c; c*c; 1]
    K_pad = ((K_aug + 7) // 8) * 8

    W = jnp.zeros((NcG_pad, K_pad), jnp.float32)
    at = jnp.zeros((Nc, NcG_pad), jnp.float32)
    kinv_bd = jnp.zeros((NcG_pad, NcG_pad), jnp.float32)
    sel = jnp.zeros((Nc, NcG_pad), jnp.float32)
    asf2 = jnp.zeros((Nc, 1), jnp.float32)

    for i, mdl in enumerate(raw):
        sf2, ls2 = mdl["sf2"], mdl["ls2"]
        Z = mdl["Z"]
        alpha = mdl["alpha"][:, 0]
        Kinv = mdl["Kinv"]
        r = slice(i * G, (i + 1) * G)

        W = W.at[r, 0:Nc].set(Z / ls2)                                   # linear term
        W = W.at[r, Nc:2 * Nc].set(-0.5 / ls2)                           # * c_j^2 term
        W = W.at[r, 2 * Nc].set(-0.5 * jnp.sum(Z * Z, axis=1) / ls2)     # bias (* 1)
        at = at.at[i, r].set(a[i] * sf2 * alpha)
        kinv_bd = kinv_bd.at[r, r].set((a[i] * sf2) ** 2 * Kinv)
        sel = sel.at[i, r].set(1.0)
        asf2 = asf2.at[i, 0].set(a[i] ** 2 * sf2)

    # bf16 inputs for the two big e-matmuls (f32 accumulation in-kernel);
    # W_aug / sel / asf2 stay f32.
    return (W, at.astype(jnp.bfloat16), kinv_bd.astype(jnp.bfloat16), sel, asf2)


# -----------------------------------------------------------------------------
# Pure-JAX reference (unfused, unfolded) of the same forward pass
# -----------------------------------------------------------------------------
def reference_forward(C, dC, raw, a):
    N = C.shape[0]
    ypred = jnp.zeros((N, 1), jnp.float32)
    yvar = jnp.zeros((N, 1), jnp.float32)
    c_sq = jnp.sum(C * C, axis=1, keepdims=True)
    for i, mdl in enumerate(raw):
        Z, alpha, Kinv = mdl["Z"], mdl["alpha"], mdl["Kinv"]
        sf2, ls2 = mdl["sf2"], mdl["ls2"]
        sqd = c_sq + jnp.sum(Z * Z, axis=1)[None, :] - 2.0 * C @ Z.T
        kxz = sf2 * jnp.exp(-0.5 * sqd / ls2)
        yp = kxz @ alpha
        yv = sf2 - jnp.sum((kxz @ Kinv) * kxz, axis=1, keepdims=True)
        dci = dC[:, i:i + 1]
        ypred = ypred + a[i] * yp * dci
        yvar = yvar + a[i] ** 2 * yv * dci ** 2
    return ypred, yvar


if __name__ == "__main__":
    N, Nc = 256, 4
    key = jax.random.PRNGKey(0)
    k_c, k_dc, k_p = jax.random.split(key, 3)

    # Channel-major (Nc, N) inputs: the kernel's preferred layout (no transpose,
    # no extra HBM round-trip).  The reference uses the row-major view.
    C_cm = jax.random.normal(k_c, (Nc, N), jnp.float32)
    dC_cm = jax.random.normal(k_dc, (Nc, N), jnp.float32)

    raw, a = build_params(k_p, Nc)
    tables = pack_tables(raw, a)

    # N=256 -> a single 256-wide lane tile (grid=(1,)); per-step overhead paid once.
    ypred, yvar = linear_joint_gp_forward(C_cm, dC_cm, tables)
    jax.block_until_ready((ypred, yvar))

    yp_ref, yv_ref = reference_forward(C_cm.T, dC_cm.T, raw, a)
    assert ypred.shape == (N, 1) and yvar.shape == (N, 1)
    # bf16 MXU inputs on the mean / Kzz^-1 matmuls set the precision floor
    # (exp, elementwise epilogue and accumulation all stay f32).
    assert jnp.allclose(ypred, yp_ref, atol=5e-2, rtol=2e-2), \
        float(jnp.max(jnp.abs(ypred - yp_ref)))
    assert jnp.allclose(yvar, yv_ref, atol=5e-2, rtol=2e-2), \
        float(jnp.max(jnp.abs(yvar - yv_ref)))

    print("KERNEL_OK")
</pallas_src>

<mosaic_0001>
module attributes {stable_mosaic.version = 11 : i64} {
  func.func @joint_gp_kernel(%arg0: i32, %arg1: memref<4x256xf32, #tpu.memory_space<vmem>>, %arg2: memref<4x256xf32, #tpu.memory_space<vmem>>, %arg3: memref<40x16xf32, #tpu.memory_space<vmem>>, %arg4: memref<4x40xbf16, #tpu.memory_space<vmem>>, %arg5: memref<40x40xbf16, #tpu.memory_space<vmem>>, %arg6: memref<4x40xf32, #tpu.memory_space<vmem>>, %arg7: memref<4x1xf32, #tpu.memory_space<vmem>>, %arg8: memref<2x256xf32, #tpu.memory_space<vmem>>) attributes {dimension_semantics = [#tpu.dimension_semantics<parallel>], iteration_bounds = array<i64: 1>, scalar_prefetch = 0 : i64, scratch_operands = 0 : i64, tpu.core_type = #tpu.core_type<tc>, window_params = [{transform_indices = @transform_0, window_bounds = array<i64: 4, 256>}, {transform_indices = @transform_1, window_bounds = array<i64: 4, 256>}, {pipeline_mode = #tpu.pipeline_mode<synchronous>, transform_indices = @transform_2, window_bounds = array<i64: 40, 16>}, {pipeline_mode = #tpu.pipeline_mode<synchronous>, transform_indices = @transform_3, window_bounds = array<i64: 4, 40>}, {pipeline_mode = #tpu.pipeline_mode<synchronous>, transform_indices = @transform_4, window_bounds = array<i64: 40, 40>}, {pipeline_mode = #tpu.pipeline_mode<synchronous>, transform_indices = @transform_5, window_bounds = array<i64: 4, 40>}, {pipeline_mode = #tpu.pipeline_mode<synchronous>, transform_indices = @transform_6, window_bounds = array<i64: 4, 1>}, {transform_indices = @transform_7, window_bounds = array<i64: 2, 256>}]} {
    %c0 = arith.constant 0 : index
    %c0_0 = arith.constant 0 : index
    %0 = vector.load %arg1[%c0, %c0_0] : memref<4x256xf32, #tpu.memory_space<vmem>>, vector<4x256xf32>
    %c0_1 = arith.constant 0 : index
    %c0_2 = arith.constant 0 : index
    %1 = vector.load %arg2[%c0_1, %c0_2] : memref<4x256xf32, #tpu.memory_space<vmem>>, vector<4x256xf32>
    %2 = arith.mulf %0, %0 : vector<4x256xf32>
    %cst = arith.constant 1.000000e+00 : f32
    %3 = vector.broadcast %cst : f32 to vector<1x256xf32>
    %cst_3 = arith.constant 0.000000e+00 : f32
    %4 = vector.broadcast %cst_3 : f32 to vector<7x256xf32>
    %5 = tpu.concatenate %0, %2, %3, %4 in 0 : vector<4x256xf32>, vector<4x256xf32>, vector<1x256xf32>, vector<7x256xf32> -> vector<16x256xf32>
    %c0_4 = arith.constant 0 : index
    %c0_5 = arith.constant 0 : index
    %6 = vector.load %arg3[%c0_4, %c0_5] : memref<40x16xf32, #tpu.memory_space<vmem>>, vector<40x16xf32>
    %cst_6 = arith.constant dense<0.000000e+00> : vector<40x256xf32>
    %7 = tpu.matmul %6, %5, %cst_6 {dimension_numbers = #tpu.dot_dimension_numbers<[1], [0], [0], [1], [0, 0, 1, 1], [], []>} : vector<40x16xf32>, vector<16x256xf32>, vector<40x256xf32> -> vector<40x256xf32>
    %8 = math.exp %7 : vector<40x256xf32>
    %9 = arith.truncf %8 : vector<40x256xf32> to vector<40x256xbf16>
    %c0_7 = arith.constant 0 : index
    %c0_8 = arith.constant 0 : index
    %10 = vector.load %arg4[%c0_7, %c0_8] : memref<4x40xbf16, #tpu.memory_space<vmem>>, vector<4x40xbf16>
    %cst_9 = arith.constant dense<0.000000e+00> : vector<4x256xf32>
    %11 = tpu.matmul %10, %9, %cst_9 {dimension_numbers = #tpu.dot_dimension_numbers<[1], [0], [0], [1], [0, 0, 1, 1], [], []>} : vector<4x40xbf16>, vector<40x256xbf16>, vector<4x256xf32> -> vector<4x256xf32>
    %c0_10 = arith.constant 0 : index
    %c0_11 = arith.constant 0 : index
    %12 = vector.load %arg5[%c0_10, %c0_11] : memref<40x40xbf16, #tpu.memory_space<vmem>>, vector<40x40xbf16>
    %cst_12 = arith.constant dense<0.000000e+00> : vector<40x256xf32>
    %13 = tpu.matmul %12, %9, %cst_12 {dimension_numbers = #tpu.dot_dimension_numbers<[1], [0], [0], [1], [0, 0, 1, 1], [], []>} : vector<40x40xbf16>, vector<40x256xbf16>, vector<40x256xf32> -> vector<40x256xf32>
    %c0_13 = arith.constant 0 : index
    %c0_14 = arith.constant 0 : index
    %14 = vector.load %arg6[%c0_13, %c0_14] : memref<4x40xf32, #tpu.memory_space<vmem>>, vector<4x40xf32>
    %15 = arith.mulf %13, %8 : vector<40x256xf32>
    %cst_15 = arith.constant dense<0.000000e+00> : vector<4x256xf32>
    %16 = tpu.matmul %14, %15, %cst_15 {dimension_numbers = #tpu.dot_dimension_numbers<[1], [0], [0], [1], [0, 0, 1, 1], [], []>} : vector<4x40xf32>, vector<40x256xf32>, vector<4x256xf32> -> vector<4x256xf32>
    %17 = arith.mulf %11, %1 : vector<4x256xf32>
    %cst_16 = arith.constant dense<0.000000e+00> : vector<256xf32>
    %18 = vector.multi_reduction <add>, %17, %cst_16 [0] : vector<4x256xf32> to vector<256xf32>
    %19 = vector.shape_cast %18 : vector<256xf32> to vector<1x256xf32>
    %c0_17 = arith.constant 0 : index
    %c0_18 = arith.constant 0 : index
    %20 = vector.load %arg7[%c0_17, %c0_18] : memref<4x1xf32, #tpu.memory_space<vmem>>, vector<4x1xf32>
    %21 = vector.broadcast %20 : vector<4x1xf32> to vector<4x256xf32>
    %22 = arith.subf %21, %16 : vector<4x256xf32>
    %23 = arith.mulf %1, %1 : vector<4x256xf32>
    %24 = arith.mulf %22, %23 : vector<4x256xf32>
    %cst_19 = arith.constant dense<0.000000e+00> : vector<256xf32>
    %25 = vector.multi_reduction <add>, %24, %cst_19 [0] : vector<4x256xf32> to vector<256xf32>
    %26 = vector.shape_cast %25 : vector<256xf32> to vector<1x256xf32>
    %27 = tpu.concatenate %19, %26 in 0 : vector<1x256xf32>, vector<1x256xf32> -> vector<2x256xf32>
    %c0_20 = arith.constant 0 : index
    %c0_21 = arith.constant 0 : index
    %28 = vector.load %arg8[%c0_20, %c0_21] : memref<2x256xf32, #tpu.memory_space<vmem>>, vector<2x256xf32>
    tpu.vector_store %arg8[%c0_20, %c0_21], %27 {strides = array<i32>} : memref<2x256xf32, #tpu.memory_space<vmem>>, vector<2x256xf32>,
    return
  }
  func.func @transform_0(%arg0: i32) -> (i32, i32) {
    %c0_i32 = arith.constant 0 : i32
    %c0_i32_0 = arith.constant 0 : i32
    return %c0_i32, %arg0 : i32, i32
  }
  func.func @transform_1(%arg0: i32) -> (i32, i32) {
    %c0_i32 = arith.constant 0 : i32
    %c0_i32_0 = arith.constant 0 : i32
    return %c0_i32, %arg0 : i32, i32
  }
  func.func @transform_2(%arg0: i32) -> (i32, i32) {
    %c0_i32 = arith.constant 0 : i32
    %c0_i32_0 = arith.constant 0 : i32
    %c0_i32_1 = arith.constant 0 : i32
    return %c0_i32, %c0_i32_0 : i32, i32
  }
  func.func @transform_3(%arg0: i32) -> (i32, i32) {
    %c0_i32 = arith.constant 0 : i32
    %c0_i32_0 = arith.constant 0 : i32
    %c0_i32_1 = arith.constant 0 : i32
    return %c0_i32, %c0_i32_0 : i32, i32
  }
  func.func @transform_4(%arg0: i32) -> (i32, i32) {
    %c0_i32 = arith.constant 0 : i32
    %c0_i32_0 = arith.constant 0 : i32
    %c0_i32_1 = arith.constant 0 : i32
    return %c0_i32, %c0_i32_0 : i32, i32
  }
  func.func @transform_5(%arg0: i32) -> (i32, i32) {
    %c0_i32 = arith.constant 0 : i32
    %c0_i32_0 = arith.constant 0 : i32
    %c0_i32_1 = arith.constant 0 : i32
    return %c0_i32, %c0_i32_0 : i32, i32
  }
  func.func @transform_6(%arg0: i32) -> (i32, i32) {
    %c0_i32 = arith.constant 0 : i32
    %c0_i32_0 = arith.constant 0 : i32
    %c0_i32_1 = arith.constant 0 : i32
    return %c0_i32, %c0_i32_0 : i32, i32
  }
  func.func @transform_7(%arg0: i32) -> (i32, i32) {
    %c0_i32 = arith.constant 0 : i32
    %c0_i32_0 = arith.constant 0 : i32
    return %c0_i32, %arg0 : i32, i32
  }
}

</mosaic_0001>

<llo_original>
// kernel: tpu_custom_call.1
$region0: #{tpu_custom_call.1}
  #allocation0 [shape = 'u32[]', space=smem, size = 0x4, offset = 0x4, fixed_abs, tag = 'smem constant byte address 0x4 - core index']
  #allocation1 [shape = 'u32[144,128]{1,0:T(1,128)}', space=vmem, size = 0x12000, scoped, tag = 'internal scratch']
  %s0 = inlined_call_operand.vmem [shape: f32[4,256], index: 0, kind: input, shape index: {}]
  %s1 = inlined_call_operand.vmem [shape: f32[4,256], index: 1, kind: input, shape index: {}]
  %s2 = inlined_call_operand.vmem [shape: f32[40,16], index: 2, kind: input, shape index: {}]
  %s3 = inlined_call_operand.vmem [shape: bf16[4,40], index: 3, kind: input, shape index: {}]
  %s4 = inlined_call_operand.vmem [shape: bf16[40,40], index: 4, kind: input, shape index: {}]
  %s5 = inlined_call_operand.vmem [shape: f32[4,40], index: 5, kind: input, shape index: {}]
  %s6 = inlined_call_operand.vmem [shape: f32[4,1], index: 6, kind: input, shape index: {}]
  %s7 = inlined_call_operand.hbm [shape: f32[2,256], index: 7, kind: output, shape index: {}]
  %s8 = sld [smem:[#allocation0]]
  $region38: #{tpu_custom_call.1} parent=0
    _
  %s10 = ssub.s32 1, %s8
  %s11 = scalar_select 0, %s10, %s8
  $region1: #{tpu_custom_call.1} parent=0
    #allocation2 [shape = 'u8[2048]{0}', space=vmem, size = 0x800, scoped, tag = 'output window, operand 0, single buffered']
    #allocation3 [shape = 's32[1]{0}', space=sflag, size = 0x4, scoped, tag = 'scoped memory for tpu_custom_call.1']
    %12 = vsyncpa [#allocation3], 0
    // Predicated region
    $region2: #{tpu_custom_call.1} parent=1 // pred_check
      _
    $region3: #{tpu_custom_call.1} parent=1 // pred_check_branch
      %14 = sbr.rel (0) target = $region5
    $region4: #{tpu_custom_call.1} parent=1 // pred_region
      _
    $region5: #{tpu_custom_call.1} parent=1 // pred_fallthru
      _
    // Predicated region
    $region6: #{tpu_custom_call.1} parent=1 // pred_check
      _
    $region7: #{tpu_custom_call.1} parent=1 // pred_check_branch
      %16 = sbr.rel (0) target = $region9
    $region8: #{tpu_custom_call.1} parent=1 // pred_region
      _
    $region9: #{tpu_custom_call.1} parent=1 // pred_fallthru
      _
    // Predicated region
    $region10: #{tpu_custom_call.1} parent=1 // pred_check
      _
    $region11: #{tpu_custom_call.1} parent=1 // pred_check_branch
      %18 = sbr.rel (0) target = $region13
    $region12: #{tpu_custom_call.1} parent=1 // pred_region
      _
    $region13: #{tpu_custom_call.1} parent=1 // pred_fallthru
      _
    // Predicated region
    $region14: #{tpu_custom_call.1} parent=1 // pred_check
      _
    $region15: #{tpu_custom_call.1} parent=1 // pred_check_branch
      %20 = sbr.rel (0) target = $region17
    $region16: #{tpu_custom_call.1} parent=1 // pred_region
      _
    $region17: #{tpu_custom_call.1} parent=1 // pred_fallthru
      _
    // Predicated region
    $region18: #{tpu_custom_call.1} parent=1 // pred_check
      _
    $region19: #{tpu_custom_call.1} parent=1 // pred_check_branch
      %22 = sbr.rel (0) target = $region21
    $region20: #{tpu_custom_call.1} parent=1 // pred_region
      _
    $region21: #{tpu_custom_call.1} parent=1 // pred_fallthru
      _
    // Predicated region
    $region22: #{tpu_custom_call.1} parent=1 // pred_check
      _
    $region23: #{tpu_custom_call.1} parent=1 // pred_check_branch
      %24 = sbr.rel (0) target = $region25
    $region24: #{tpu_custom_call.1} parent=1 // pred_region
      _
    $region25: #{tpu_custom_call.1} parent=1 // pred_fallthru
      _
    // Predicated region
    $region26: #{tpu_custom_call.1} parent=1 // pred_check
      _
    $region27: #{tpu_custom_call.1} parent=1 // pred_check_branch
      %26 = sbr.rel (0) target = $region29
    $region28: #{tpu_custom_call.1} parent=1 // pred_region
      _
    $region29: #{tpu_custom_call.1} parent=1 // pred_fallthru
      _
    %v28 = vld [vmem:[%s0] sm:$0xff]
    %v29 = vld [vmem:[%s1] sm:$0xff]
    %v30 = vmul.f32 %v28, %v28
    %v32 = vcombine.high %v28, %v28
    %v35 = vcombine.low %v30, %v30
    %vm37 = vcmask 1043456
    %v38 = vsel %vm37, %v28, %v35
    %v39 = vsel %vm37, %v32, %v30
    %vm40 = vcmask 1040384
    %v41 = vsel %vm40, 1.0, 0.0
    %v42 = vld [vmem:[%s2] sm:$0xff]
    %v43 = vld [vmem:[%s2 + $0x8] sm:$0xff]
    %v44 = vld [vmem:[%s2 + $0x10] sm:$0xff]
    %v45 = vld [vmem:[%s2 + $0x18] sm:$0xff]
    %v46 = vld [vmem:[%s2 + $0x20] sm:$0xff]
    %vm47 = vcmask 130048
    %v49 = vsel %vm47, %v42, 0
    %v52 = vsel %vm47, %v43, 0
    %v55 = vsel %vm47, %v44, 0
    %v58 = vsel %vm47, %v45, 0
    %v61 = vsel %vm47, %v46, 0
    %63 = vmatprep.subr.mxu0 %v39
    %64 = vmatpush1.msra.mxu0 %v38
    %65 = vmatprep.subr.mxu0 %v41
    %66 = vmatpush1.msra.mxu0 %v41
    %67 = vmatprep.subr.mxu0 0.0
    %68 = vmatpush1.msra.mxu0 0.0
    %69 = vmatprep.subr.mxu0 0.0
    %70 = vmatpush1.msra.mxu0 0.0
    %71 = vmatprep.subr.mxu0 0.0
    %72 = vmatpush1.msra.mxu0 0.0
    %73 = vmatprep.subr.mxu0 0.0
    %74 = vmatpush1.msra.mxu0 0.0
    %75 = vmatprep.subr.mxu0 0.0
    %76 = vmatpush1.msra.mxu0 0.0
    %77 = vmatprep.subr.mxu0 0.0
    %78 = vmatpush1.msra.mxu0 0.0
    %79 = vmatprep.subr.mxu0 0.0
    %80 = vmatpush1.msra.mxu0 0.0
    %81 = vmatprep.subr.mxu0 0.0
    %82 = vmatpush1.msra.mxu0 0.0
    %83 = vmatprep.subr.mxu0 0.0
    %84 = vmatpush1.msra.mxu0 0.0
    %85 = vmatprep.subr.mxu0 0.0
    %86 = vmatpush1.msra.mxu0 0.0
    %87 = vmatprep.subr.mxu0 0.0
    %88 = vmatpush1.msra.mxu0 0.0
    %89 = vmatprep.subr.mxu0 0.0
    %90 = vmatpush1.msra.mxu0 0.0
    %91 = vmatprep.subr.mxu0 0.0
    %92 = vmatpush1.msra.mxu0 0.0
    %93 = vmatprep.subr.mxu0 0.0
    %94 = vmatpush1.msra.mxu0 0.0
    %95 = vmatprep.subr.mxu0 0.0
    %96 = vmatpush1.msra.mxu0 0.0
    %97 = vmatprep.subr.mxu0 0.0
    %98 = vmatpush1.msra.mxu0 0.0
    %99 = vmatprep.subr.mxu0 0.0
    %100 = vmatpush1.msra.mxu0 0.0
    %101 = vmatprep.subr.mxu0 0.0
    %102 = vmatpush1.msra.mxu0 0.0
    %103 = vmatprep.subr.mxu0 0.0
    %104 = vmatpush1.msra.mxu0 0.0
    %105 = vmatprep.subr.mxu0 0.0
    %106 = vmatpush1.msra.mxu0 0.0
    %107 = vmatprep.subr.mxu0 0.0
    %108 = vmatpush1.msra.mxu0 0.0
    %109 = vmatprep.subr.mxu0 0.0
    %110 = vmatpush1.msra.mxu0 0.0
    %111 = vmatprep.subr.mxu0 0.0
    %112 = vmatpush1.msra.mxu0 0.0
    %113 = vmatprep.subr.mxu0 0.0
    %114 = vmatpush1.msra.mxu0 0.0
    %115 = vmatprep.subr.mxu0 0.0
    %116 = vmatpush1.msra.mxu0 0.0
    %117 = vmatprep.subr.mxu0 0.0
    %118 = vmatpush1.msra.mxu0 0.0
    %119 = vmatprep.subr.mxu0 0.0
    %120 = vmatpush1.msra.mxu0 0.0
    %121 = vmatprep.subr.mxu0 0.0
    %122 = vmatpush1.msra.mxu0 0.0
    %123 = vmatprep.subr.mxu0 0.0
    %124 = vmatpush1.msra.mxu0 0.0
    %125 = vmatprep.subr.mxu0 0.0
    %126 = vmatpush1.msra.mxu0 0.0
    %127 = vmatprep.mubr.f32.mxu0 0.0
    %128 = vmatmul.mubr.f32.gmra.mrb[0].mxu0 %v49
    %v129 = vpop.f32.mrb[0].mxu0
    %v130 = vadd.f32 0.0, %v129
    %v131 = vpop.f32.mrb[0].mxu0
    %v132 = vadd.f32 0.0, %v131
    %133 = vmatprep.mubr.f32.mxu0 0.0
    %134 = vmatmul.mubr.f32.gmra.mrb[0].mxu0 %v52
    %v135 = vpop.f32.mrb[0].mxu0
    %v136 = vadd.f32 0.0, %v135
    %v137 = vpop.f32.mrb[0].mxu0
    %v138 = vadd.f32 0.0, %v137
    %139 = vmatprep.mubr.f32.mxu0 0.0
    %140 = vmatmul.mubr.f32.gmra.mrb[0].mxu0 %v55
    %v141 = vpop.f32.mrb[0].mxu0
    %v142 = vadd.f32 0.0, %v141
    %v143 = vpop.f32.mrb[0].mxu0
    %v144 = vadd.f32 0.0, %v143
    %145 = vmatprep.mubr.f32.mxu0 0.0
    %146 = vmatmul.mubr.f32.gmra.mrb[0].mxu0 %v58
    %v147 = vpop.f32.mrb[0].mxu0
    %v148 = vadd.f32 0.0, %v147
    %v149 = vpop.f32.mrb[0].mxu0
    %v150 = vadd.f32 0.0, %v149
    %151 = vmatprep.mubr.f32.mxu0 0.0
    %152 = vmatmul.mubr.f32.gmra.mrb[0].mxu0 %v61
    %v153 = vpop.f32.mrb[0].mxu0
    %v154 = vadd.f32 0.0, %v153
    %v155 = vpop.f32.mrb[0].mxu0
    %v156 = vadd.f32 0.0, %v155
    %157 = vdwg.mxu0
    %v158 = vmul.f32 %v130, 1.442695
    %v159 = vpow.pop %v158
    %v160 = vmul.f32 %v132, 1.442695
    %v161 = vpow.pop %v160
    %v162 = vmul.f32 %v136, 1.442695
    %v163 = vpow.pop %v162
    %v164 = vmul.f32 %v138, 1.442695
    %v165 = vpow.pop %v164
    %v166 = vmul.f32 %v142, 1.442695
    %v167 = vpow.pop %v166
    %v168 = vmul.f32 %v144, 1.442695
    %v169 = vpow.pop %v168
    %v170 = vmul.f32 %v148, 1.442695
    %v171 = vpow.pop %v170
    %v172 = vmul.f32 %v150, 1.442695
    %v173 = vpow.pop %v172
    %v174 = vmul.f32 %v154, 1.442695
    %v175 = vpow.pop %v174
    %v176 = vmul.f32 %v156, 1.442695
    %v177 = vpow.pop %v176
    %v178 = vpack.c.bf16 %v163, %v159
    %v179 = vpack.c.bf16 %v165, %v161
    %v180 = vpack.c.bf16 %v171, %v167
    %v181 = vpack.c.bf16 %v173, %v169
    %v182 = vpack.c.bf16 %v175, %v175
    %v183 = vpack.c.bf16 %v177, %v177
    %v184 = vld [vmem:[%s3] sm:$0x3]
    %vm185 = vcmask 326656
    %v187 = vsel %vm185, %v184, 0
    %v190 = vsel %vm37, %v182, 0
    %v193 = vsel %vm37, %v183, 0
    %195 = vmatprep.subr.bf16.mxu0 %v179
    %196 = vmatpush1.bf16.msra.mxu0 %v178
    %197 = vmatprep.subr.bf16.mxu0 %v181
    %198 = vmatpush1.bf16.msra.mxu0 %v180
    %199 = vmatprep.subr.bf16.mxu0 %v193
    %200 = vmatpush1.bf16.msra.mxu0 %v190
    %201 = vmatprep.subr.bf16.mxu0 0
    %202 = vmatpush1.bf16.msra.mxu0 0
    %203 = vmatprep.subr.bf16.mxu0 0
    %204 = vmatpush1.bf16.msra.mxu0 0
    %205 = vmatprep.subr.bf16.mxu0 0
    %206 = vmatpush1.bf16.msra.mxu0 0
    %207 = vmatprep.subr.bf16.mxu0 0
    %208 = vmatpush1.bf16.msra.mxu0 0
    %209 = vmatprep.subr.bf16.mxu0 0
    %210 = vmatpush1.bf16.msra.mxu0 0
    %211 = vmatprep.subr.bf16.mxu0 0
    %212 = vmatpush1.bf16.msra.mxu0 0
    %213 = vmatprep.subr.bf16.mxu0 0
    %214 = vmatpush1.bf16.msra.mxu0 0
    %215 = vmatprep.subr.bf16.mxu0 0
    %216 = vmatpush1.bf16.msra.mxu0 0
    %217 = vmatprep.subr.bf16.mxu0 0
    %218 = vmatpush1.bf16.msra.mxu0 0
    %219 = vmatprep.subr.bf16.mxu0 0
    %220 = vmatpush1.bf16.msra.mxu0 0
    %221 = vmatprep.subr.bf16.mxu0 0
    %222 = vmatpush1.bf16.msra.mxu0 0
    %223 = vmatprep.subr.bf16.mxu0 0
    %224 = vmatpush1.bf16.msra.mxu0 0
    %225 = vmatprep.subr.bf16.mxu0 0
    %226 = vmatpush1.bf16.msra.mxu0 0
    %227 = vmatprep.mubr.bf16.mxu0 0
    %228 = vmatmul.mubr.bf16.gmra.mrb[0].mxu0 %v187
    %v229 = vpop.f32.mrb[0].mxu0
    %v230 = vadd.f32 0.0, %v229
    %v231 = vpop.f32.mrb[0].mxu0
    %v232 = vadd.f32 0.0, %v231
    %v233 = vpop.f32.mrb[0].mxu0
    %v234 = vpop.f32.mrb[0].mxu0
    %235 = vdwg.mxu0
    %v236 = vld [vmem:[%s4] sm:$0xf]
    %v237 = vld [vmem:[%s4 + $0x4] sm:$0xf]
    %v238 = vld [vmem:[%s4 + $0x8] sm:$0xf]
    %v239 = vld [vmem:[%s4 + $0xc] sm:$0xf]
    %v240 = vld [vmem:[%s4 + $0x10] sm:$0xf]
    %v246 = vunpack.c.l.b16 %v236
    %v247 = vunpack.c.l.b16 %v237
    %v248 = vunpack.c.l.b16 %v238
    %v249 = vunpack.c.l.b16 %v239
    %v250 = vunpack.c.l.b16 %v240
    %v251 = vpack.c.b16 %v247, %v246
    %v252 = vpack.c.b16 %v249, %v248
    %v253 = vpack.c.b16 %v250, %v250
    %v255 = vsel %vm185, %v251, 0
    %v258 = vsel %vm185, %v252, 0
    %v261 = vsel %vm185, %v253, 0
    %263 = vmatprep.subr.bf16.mxu0 %v179
    %264 = vmatpush1.bf16.msra.mxu0 %v178
    %265 = vmatprep.subr.bf16.mxu0 %v181
    %266 = vmatpush1.bf16.msra.mxu0 %v180
    %267 = vmatprep.subr.bf16.mxu0 %v193
    %268 = vmatpush1.bf16.msra.mxu0 %v190
    %269 = vmatprep.subr.bf16.mxu0 0
    %270 = vmatpush1.bf16.msra.mxu0 0
    %271 = vmatprep.subr.bf16.mxu0 0
    %272 = vmatpush1.bf16.msra.mxu0 0
    %273 = vmatprep.subr.bf16.mxu0 0
    %274 = vmatpush1.bf16.msra.mxu0 0
    %275 = vmatprep.subr.bf16.mxu0 0
    %276 = vmatpush1.bf16.msra.mxu0 0
    %277 = vmatprep.subr.bf16.mxu0 0
    %278 = vmatpush1.bf16.msra.mxu0 0
    %279 = vmatprep.subr.bf16.mxu0 0
    %280 = vmatpush1.bf16.msra.mxu0 0
    %281 = vmatprep.subr.bf16.mxu0 0
    %282 = vmatpush1.bf16.msra.mxu0 0
    %283 = vmatprep.subr.bf16.mxu0 0
    %284 = vmatpush1.bf16.msra.mxu0 0
    %285 = vmatprep.subr.bf16.mxu0 0
    %286 = vmatpush1.bf16.msra.mxu0 0
    %287 = vmatprep.subr.bf16.mxu0 0
    %288 = vmatpush1.bf16.msra.mxu0 0
    %289 = vmatprep.subr.bf16.mxu0 0
    %290 = vmatpush1.bf16.msra.mxu0 0
    %291 = vmatprep.subr.bf16.mxu0 0
    %292 = vmatpush1.bf16.msra.mxu0 0
    %293 = vmatprep.subr.bf16.mxu0 0
    %294 = vmatpush1.bf16.msra.mxu0 0
    %295 = vmatprep.mubr.bf16.mxu0 0
    %296 = vmatmul.mubr.bf16.gmra.mrb[0].mxu0 %v255
    %v297 = vpop.f32.mrb[0].mxu0
    %v298 = vadd.f32 0.0, %v297
    %v299 = vpop.f32.mrb[0].mxu0
    %v300 = vadd.f32 0.0, %v299
    %v301 = vpop.f32.mrb[0].mxu0
    %v302 = vadd.f32 0.0, %v301
    %v303 = vpop.f32.mrb[0].mxu0
    %v304 = vadd.f32 0.0, %v303
    %305 = vmatprep.mubr.bf16.mxu0 0
    %306 = vmatmul.mubr.bf16.gmra.mrb[0].mxu0 %v258
    %v307 = vpop.f32.mrb[0].mxu0
    %v308 = vadd.f32 0.0, %v307
    %v309 = vpop.f32.mrb[0].mxu0
    %v310 = vadd.f32 0.0, %v309
    %v311 = vpop.f32.mrb[0].mxu0
    %v312 = vadd.f32 0.0, %v311
    %v313 = vpop.f32.mrb[0].mxu0
    %v314 = vadd.f32 0.0, %v313
    %315 = vmatprep.mubr.bf16.mxu0 0
    %316 = vmatmul.mubr.bf16.gmra.mrb[0].mxu0 %v261
    %v317 = vpop.f32.mrb[0].mxu0
    %v318 = vadd.f32 0.0, %v317
    %v319 = vpop.f32.mrb[0].mxu0
    %v320 = vadd.f32 0.0, %v319
    %v321 = vpop.f32.mrb[0].mxu0
    %v322 = vpop.f32.mrb[0].mxu0
    %323 = vdwg.mxu0
    %v324 = vld [vmem:[%s5] sm:$0xf]
    %v325 = vmul.f32 %v298, %v159
    %v326 = vmul.f32 %v300, %v161
    %v327 = vmul.f32 %v302, %v163
    %v328 = vmul.f32 %v304, %v165
    %v329 = vmul.f32 %v308, %v167
    %v330 = vmul.f32 %v310, %v169
    %v331 = vmul.f32 %v312, %v171
    %v332 = vmul.f32 %v314, %v173
    %v333 = vmul.f32 %v318, %v175
    %v334 = vmul.f32 %v320, %v177
    %v336 = vsel %vm185, %v324, 0
    %338 = vmatprep.subr.mxu0 %v326
    %339 = vmatpush1.msra.mxu0 %v325
    %340 = vmatprep.subr.mxu0 %v328
    %341 = vmatpush1.msra.mxu0 %v327
    %342 = vmatprep.subr.mxu0 %v330
    %343 = vmatpush1.msra.mxu0 %v329
    %344 = vmatprep.subr.mxu0 %v332
    %345 = vmatpush1.msra.mxu0 %v331
    %346 = vmatprep.subr.mxu0 %v334
    %347 = vmatpush1.msra.mxu0 %v333
    %348 = vmatprep.subr.mxu0 0.0
    %349 = vmatpush1.msra.mxu0 0.0
    %350 = vmatprep.subr.mxu0 0.0
    %351 = vmatpush1.msra.mxu0 0.0
    %352 = vmatprep.subr.mxu0 0.0
    %353 = vmatpush1.msra.mxu0 0.0
    %354 = vmatprep.subr.mxu0 0.0
    %355 = vmatpush1.msra.mxu0 0.0
    %356 = vmatprep.subr.mxu0 0.0
    %357 = vmatpush1.msra.mxu0 0.0
    %358 = vmatprep.subr.mxu0 0.0
    %359 = vmatpush1.msra.mxu0 0.0
    %360 = vmatprep.subr.mxu0 0.0
    %361 = vmatpush1.msra.mxu0 0.0
    %362 = vmatprep.subr.mxu0 0.0
    %363 = vmatpush1.msra.mxu0 0.0
    %364 = vmatprep.subr.mxu0 0.0
    %365 = vmatpush1.msra.mxu0 0.0
    %366 = vmatprep.subr.mxu0 0.0
    %367 = vmatpush1.msra.mxu0 0.0
    %368 = vmatprep.subr.mxu0 0.0
    %369 = vmatpush1.msra.mxu0 0.0
    %370 = vmatprep.subr.mxu0 0.0
    %371 = vmatpush1.msra.mxu0 0.0
    %372 = vmatprep.subr.mxu0 0.0
    %373 = vmatpush1.msra.mxu0 0.0
    %374 = vmatprep.subr.mxu0 0.0
    %375 = vmatpush1.msra.mxu0 0.0
    %376 = vmatprep.subr.mxu0 0.0
    %377 = vmatpush1.msra.mxu0 0.0
    %378 = vmatprep.subr.mxu0 0.0
    %379 = vmatpush1.msra.mxu0 0.0
    %380 = vmatprep.subr.mxu0 0.0
    %381 = vmatpush1.msra.mxu0 0.0
    %382 = vmatprep.subr.mxu0 0.0
    %383 = vmatpush1.msra.mxu0 0.0
    %384 = vmatprep.subr.mxu0 0.0
    %385 = vmatpush1.msra.mxu0 0.0
    %386 = vmatprep.subr.mxu0 0.0
    %387 = vmatpush1.msra.mxu0 0.0
    %388 = vmatprep.subr.mxu0 0.0
    %389 = vmatpush1.msra.mxu0 0.0
    %390 = vmatprep.subr.mxu0 0.0
    %391 = vmatpush1.msra.mxu0 0.0
    %392 = vmatprep.subr.mxu0 0.0
    %393 = vmatpush1.msra.mxu0 0.0
    %394 = vmatprep.subr.mxu0 0.0
    %395 = vmatpush1.msra.mxu0 0.0
    %396 = vmatprep.subr.mxu0 0.0
    %397 = vmatpush1.msra.mxu0 0.0
    %398 = vmatprep.subr.mxu0 0.0
    %399 = vmatpush1.msra.mxu0 0.0
    %400 = vmatprep.subr.mxu0 0.0
    %401 = vmatpush1.msra.mxu0 0.0
    %402 = vmatprep.mubr.f32.mxu0 0.0
    %403 = vmatmul.mubr.f32.gmra.mrb[0].mxu0 %v336
    %v404 = vpop.f32.mrb[0].mxu0
    %v405 = vadd.f32 0.0, %v404
    %v406 = vpop.f32.mrb[0].mxu0
    %v407 = vadd.f32 0.0, %v406
    %408 = vdwg.mxu0
    %v410 = vcombine.high %v29, %v29
    %v412 = vmul.f32 %v230, %v29
    %v413 = vmul.f32 %v232, %v410
    %v414 = vsel %vm37, %v412, 0.0
    %v415 = vrot.slane %v414, 4
    %v416 = vadd.f32 %v414, %v415
    %v417 = vrot.slane %v416, 2
    %v418 = vadd.f32 %v416, %v417
    %v419 = vrot.slane %v418, 1
    %v420 = vadd.f32 %v418, %v419
    %v421 = vsel %vm37, %v413, 0.0
    %v422 = vrot.slane %v421, 4
    %v423 = vadd.f32 %v421, %v422
    %v424 = vrot.slane %v423, 2
    %v425 = vadd.f32 %v423, %v424
    %v426 = vrot.slane %v425, 1
    %v427 = vadd.f32 %v425, %v426
    %v428 = vld [vmem:[%s6] sm:$0xf]
    %430 = vset.pattern.permute.xlu0 0
    %431 = vperm.xlu0 %430, %v428
    %v432 = vpop.permute.xlu0 %431
    %v434 = vsub.f32 %v432, %v405
    %v435 = vsub.f32 %v432, %v407
    %v436 = vmul.f32 %v29, %v29
    %v438 = vcombine.high %v436, %v436
    %v440 = vmul.f32 %v434, %v436
    %v441 = vmul.f32 %v435, %v438
    %v442 = vsel %vm37, %v440, 0.0
    %v443 = vrot.slane %v442, 4
    %v444 = vadd.f32 %v442, %v443
    %v445 = vrot.slane %v444, 2
    %v446 = vadd.f32 %v444, %v445
    %v447 = vrot.slane %v446, 1
    %v448 = vadd.f32 %v446, %v447
    %v449 = vsel %vm37, %v441, 0.0
    %v450 = vrot.slane %v449, 4
    %v451 = vadd.f32 %v449, %v450
    %v452 = vrot.slane %v451, 2
    %v453 = vadd.f32 %v451, %v452
    %v454 = vrot.slane %v453, 1
    %v455 = vadd.f32 %v453, %v454
    %v456 = vsel %vm40, %v420, %v448
    %v457 = vsel %vm40, %v427, %v455
    %v460 = vcombine.low %v456, %v457
    %v462 = vunpack.c.l.s4 1983009808
    %v463 = vunpack.c.0.s8 %v462
    %v464 = vlaneseq
    %v465 = vshrl.u32 %v464, 7
    %v466 = vsub.s32 %v463, %v465
    %v467 = vrot.slane %v460, %v466
    %469 = vst [vmem:[#allocation2] sm:$0xf] %v467
    // Predicated region
    $region30: #{tpu_custom_call.1} parent=1 // pred_check
      _
    $region31: #{tpu_custom_call.1} parent=1 // pred_check_branch
      %471 = sbr.rel (0) target = $region33
    $region32: #{tpu_custom_call.1} parent=1 // pred_region
      %s473 = ssub.s32 64, 64
      %474 = vsyncadd [#allocation3], %s473
      %s476 = sshll.u32 [#allocation2], 4
      %s477 = int_to_ptr.vmem [resolvable:$true] %s476
      %479 = dma.vmem_to_hbm [thread:$0]  %s477, 64, %s7, [#allocation3]
    $region33: #{tpu_custom_call.1} parent=1 // pred_fallthru
      _
    // Predicated region
    $region34: #{tpu_custom_call.1} parent=1 // pred_check
      _
    $region35: #{tpu_custom_call.1} parent=1 // pred_check_branch
      %481 = sbr.rel (0) target = $region37
    $region36: #{tpu_custom_call.1} parent=1 // pred_region
      %482 = dma.done [#allocation3], 64
    $region37: #{tpu_custom_call.1} parent=1 // pred_fallthru
      _
    %483 = vsyncpa [#allocation3], 1

</llo_original>
